<compile_context>
chip_gen: v6e
topology: v6e:2x2x1
jax: 0.10.0
libtpu: 0.0.40
codegen_flags: <defaults>
</compile_context>

<pallas_src>
import jax
import jax.numpy as jnp
from jax.experimental import pallas as pl
from jax.experimental.pallas import tpu as pltpu

_LANES = 512                            # lane-dense last dim (multiple of 128)
_TARGET_BLOCK_BYTES = 8 * 1024 * 1024   # ~8 MiB DMA per grid step
_VMEM_LIMIT_BYTES = 48 * 1024 * 1024    # 4x block (double-buffered in+out) + headroom
_MIN_PALLAS_ELEMS = 64 * 1024           # below this, XLA's fused multiply wins


def _scale_kernel(scale_ref, x_ref, o_ref):
    # scale_ref: (1,1) f32 in SMEM.  One scalar load + a VPU broadcast
    # multiply per vreg, fully hidden under the block DMA (mem-bound kernel).
    scale = scale_ref[0, 0].astype(o_ref.dtype)
    o_ref[...] = x_ref[...] * scale


def fixed_scale_controller(x: jax.Array,
                           scale_rate: float = 50.0,
                           dim: int = 0,
                           p: int = 1,
                           *,
                           min_pallas_elems: int = _MIN_PALLAS_ELEMS,
                           target_block_bytes: int = _TARGET_BLOCK_BYTES) -> jax.Array:
    """Pallas equivalent of FixedScaleController(normalizer=None).forward.

    dim / p are accepted for API parity but unused (no normalizer configured).
    """
    del dim, p  # only consumed by the (absent) normalizer

    size = int(x.size)
    # Fallback: empty / tiny / ragged (size not a multiple of _LANES) /
    # non-float inputs.  XLA's fused multiply is already at HBM roofline,
    # avoids any pad+slice passes, and keeps promotion identical to PyTorch.
    if (size == 0
            or size < min_pallas_elems
            or size % _LANES != 0
            or not jnp.issubdtype(x.dtype, jnp.floating)):
        return x * scale_rate

    orig_shape = x.shape
    itemsize = jnp.dtype(x.dtype).itemsize
    rows = size // _LANES
    x2d = x.reshape(rows, _LANES)          # metadata-only: no pad, no copy

    # Block sized in bytes, rounded down to the packed-sublane multiple.
    sublane = max(8, 32 // itemsize)       # 8 f32 / 16 bf16 / 32 int8-class
    block_rows = max(
        sublane,
        (target_block_bytes // (_LANES * itemsize)) // sublane * sublane)
    if block_rows >= rows:
        block_rows = rows                  # single full-extent block
    grid = (pl.cdiv(rows, block_rows),)    # ragged edge block is masked by Pallas

    scale_arr = jnp.full((1, 1), scale_rate, dtype=jnp.float32)

    out2d = pl.pallas_call(
        _scale_kernel,
        out_shape=jax.ShapeDtypeStruct((rows, _LANES), x.dtype),
        grid=grid,
        in_specs=[
            pl.BlockSpec(memory_space=pltpu.MemorySpace.SMEM),     # scale scalar
            pl.BlockSpec((block_rows, _LANES), lambda i: (i, 0)),  # x tile
        ],
        out_specs=pl.BlockSpec((block_rows, _LANES), lambda i: (i, 0)),
        compiler_params=pltpu.CompilerParams(
            # "parallel": megacore-shards the 1-D grid on v7x; neutral on
            # single-TC v5e/v6e.
            dimension_semantics=("parallel",),
            vmem_limit_bytes=_VMEM_LIMIT_BYTES,
        ),
        cost_estimate=pl.CostEstimate(
            flops=size,
            transcendentals=0,
            bytes_accessed=2 * size * itemsize),
    )(scale_arr, x2d)

    return out2d.reshape(orig_shape)


if __name__ == "__main__":
    key = jax.random.PRNGKey(0)
    scale_rate = 50.0

    # 1) Small NCHW-style input (typical module use) -> plain-JAX fast path.
    x_small = jax.random.normal(key, (2, 4, 16, 16), dtype=jnp.float32)
    y_fast = jax.block_until_ready(fixed_scale_controller(x_small, scale_rate))
    assert y_fast.shape == x_small.shape and y_fast.dtype == x_small.dtype
    assert jnp.allclose(y_fast, x_small * scale_rate, rtol=1e-6, atol=1e-6)

    # 2) Same small input with the Pallas path forced (single full-extent block).
    y_p = jax.block_until_ready(
        fixed_scale_controller(x_small, scale_rate, min_pallas_elems=0))
    assert y_p.shape == x_small.shape and y_p.dtype == x_small.dtype
    assert jnp.allclose(y_p, x_small * scale_rate, rtol=1e-6, atol=1e-6)

    # 3) Multi-step grid with a ragged edge block (rows=260, block_rows=8):
    #    a tiny target_block_bytes forces many grid steps for test coverage.
    x_ragged = jax.random.normal(jax.random.PRNGKey(0), (4, 5, 13, 512),
                                 dtype=jnp.float32)
    y_r = jax.block_until_ready(
        fixed_scale_controller(x_ragged, scale_rate, min_pallas_elems=0,
                               target_block_bytes=8 * 512 * 4))
    assert jnp.allclose(y_r, x_ragged * scale_rate, rtol=1e-6, atol=1e-6)

    # 4) bf16 input: exercises the packed-sublane block rounding (multiple of
    #    16 rows) and the in-kernel scale cast.
    x_bf16 = jax.random.normal(jax.random.PRNGKey(0), (4, 4, 32, 512),
                               dtype=jnp.bfloat16)
    y_b = jax.block_until_ready(
        fixed_scale_controller(x_bf16, scale_rate, min_pallas_elems=0,
                               target_block_bytes=32 * 1024))
    assert y_b.shape == x_bf16.shape and y_b.dtype == jnp.bfloat16
    assert jnp.allclose(y_b.astype(jnp.float32),
                        (x_bf16 * scale_rate).astype(jnp.float32),
                        rtol=1e-2, atol=1e-2)

    # 5) Size not a multiple of 512 -> fallback path (no pad / slice passes).
    x_odd = jax.random.normal(key, (2, 4, 16, 17), dtype=jnp.float32)
    y_o = jax.block_until_ready(fixed_scale_controller(x_odd, scale_rate))
    assert y_o.shape == x_odd.shape and y_o.dtype == x_odd.dtype
    assert jnp.allclose(y_o, x_odd * scale_rate, rtol=1e-6, atol=1e-6)

    print("KERNEL_OK")
</pallas_src>

<mosaic_0001>
module attributes {stable_mosaic.version = 11 : i64} {
  func.func @_scale_kernel(%arg0: i32, %arg1: memref<1x1xf32, #tpu.memory_space<smem>>, %arg2: memref<4x512xf32, #tpu.memory_space<vmem>>, %arg3: memref<4x512xf32, #tpu.memory_space<vmem>>) attributes {dimension_semantics = [#tpu.dimension_semantics<parallel>], iteration_bounds = array<i64: 1>, scalar_prefetch = 0 : i64, scratch_operands = 0 : i64, tpu.core_type = #tpu.core_type<tc>, window_params = [{transform_indices = @transform_0, window_bounds = array<i64: 1, 1>}, {transform_indices = @transform_1, window_bounds = array<i64: 4, 512>}, {transform_indices = @transform_2, window_bounds = array<i64: 4, 512>}]} {
    %c0 = arith.constant 0 : index
    %c0_0 = arith.constant 0 : index
    %0 = memref.load %arg1[%c0, %c0_0] : memref<1x1xf32, #tpu.memory_space<smem>>
    %c0_1 = arith.constant 0 : index
    %c0_2 = arith.constant 0 : index
    %1 = vector.load %arg2[%c0_1, %c0_2] : memref<4x512xf32, #tpu.memory_space<vmem>>, vector<4x512xf32>
    %2 = vector.broadcast %0 : f32 to vector<4x512xf32>
    %3 = arith.mulf %1, %2 : vector<4x512xf32>
    %c0_3 = arith.constant 0 : index
    %c0_4 = arith.constant 0 : index
    %4 = vector.load %arg3[%c0_3, %c0_4] : memref<4x512xf32, #tpu.memory_space<vmem>>, vector<4x512xf32>
    tpu.vector_store %arg3[%c0_3, %c0_4], %3 {strides = array<i32>} : memref<4x512xf32, #tpu.memory_space<vmem>>, vector<4x512xf32>,
    return
  }
  func.func @transform_0(%arg0: i32) -> (i32, i32) {
    %c0_i32 = arith.constant 0 : i32
    %c0_i32_0 = arith.constant 0 : i32
    %c0_i32_1 = arith.constant 0 : i32
    return %c0_i32, %c0_i32_0 : i32, i32
  }
  func.func @transform_1(%arg0: i32) -> (i32, i32) {
    %c0_i32 = arith.constant 0 : i32
    %c0_i32_0 = arith.constant 0 : i32
    return %arg0, %c0_i32 : i32, i32
  }
  func.func @transform_2(%arg0: i32) -> (i32, i32) {
    %c0_i32 = arith.constant 0 : i32
    %c0_i32_0 = arith.constant 0 : i32
    return %arg0, %c0_i32 : i32, i32
  }
}

</mosaic_0001>

<llo_original>
// kernel: tpu_custom_call.1
$region0: #{tpu_custom_call.1}
  #allocation0 [shape = 'u32[]', space=smem, size = 0x4, offset = 0x4, fixed_abs, tag = 'smem constant byte address 0x4 - core index']
  #allocation1 [shape = 'u32[144,128]{1,0:T(1,128)}', space=vmem, size = 0x12000, scoped, tag = 'internal scratch']
  #allocation2 [shape = 'f32[1,1]{1,0:T(1,128)S(6)}', space=smem, size = 0x200, scoped, tag = 'scoped memory for tpu_custom_call.1']
  %s0 = inlined_call_operand.<no memory space> [shape: f32[1,1], index: 0, kind: input, shape index: {}]
  %s1 = inlined_call_operand.hbm [shape: f32[4,512], index: 1, kind: input, shape index: {}]
  %s2 = inlined_call_operand.hbm [shape: f32[4,512], index: 2, kind: output, shape index: {}]
  %s3 = sld [smem:[#allocation0]]
  $region22: #{tpu_custom_call.1} parent=0
    _
  %s5 = ssub.s32 1, %s3
  %s6 = scalar_select 0, %s5, %s3
  %7 = sst [smem:[#allocation2]] %s0
  $region1: #{tpu_custom_call.1} parent=0
    #allocation3 [shape = 'u8[8192]{0}', space=vmem, size = 0x2000, scoped, tag = 'input window, operand 1, single buffered']
    #allocation4 [shape = 's32[1]{0}', space=sflag, size = 0x4, scoped, tag = 'scoped memory for tpu_custom_call.1']
    #allocation5 [shape = 's32[1]{0}', space=sflag, size = 0x4, scoped, tag = 'scoped memory for tpu_custom_call.1']
    #allocation6 [shape = 'u8[8192]{0}', space=vmem, size = 0x2000, scoped, tag = 'output window, operand 0, single buffered']
    %8 = vsyncpa [#allocation4], 0
    %9 = vsyncpa [#allocation5], 0
    // Predicated region
    $region2: #{tpu_custom_call.1} parent=1 // pred_check
      _
    $region3: #{tpu_custom_call.1} parent=1 // pred_check_branch
      %11 = sbr.rel (0) target = $region5
    $region4: #{tpu_custom_call.1} parent=1 // pred_region
      _
    $region5: #{tpu_custom_call.1} parent=1 // pred_fallthru
      _
    // Predicated region
    $region6: #{tpu_custom_call.1} parent=1 // pred_check
      _
    $region7: #{tpu_custom_call.1} parent=1 // pred_check_branch
      %13 = sbr.rel (0) target = $region9
    $region8: #{tpu_custom_call.1} parent=1 // pred_region
      %s15 = ssub.s32 256, 256
      %16 = vsyncadd [#allocation4], %s15
      %s18 = sshll.u32 [#allocation3], 4
      %s19 = int_to_ptr.vmem [resolvable:$true] %s18
      %21 = dma.hbm_to_vmem [thread:$0]  %s1, 256, %s19, [#allocation4]
    $region9: #{tpu_custom_call.1} parent=1 // pred_fallthru
      _
    // Predicated region
    $region10: #{tpu_custom_call.1} parent=1 // pred_check
      _
    $region11: #{tpu_custom_call.1} parent=1 // pred_check_branch
      %23 = sbr.rel (0) target = $region13
    $region12: #{tpu_custom_call.1} parent=1 // pred_region
      %24 = dma.done [#allocation4], 256
    $region13: #{tpu_custom_call.1} parent=1 // pred_fallthru
      _
    %s25 = sld [smem:[#allocation2]]
    %v26 = vld [vmem:[#allocation3] sm:$0xff]
    %v27 = vld [vmem:[#allocation3 + $0x8] sm:$0xff]
    %v28 = vstv %s25
    %v29 = vmul.f32 %v26, %v28
    %v30 = vmul.f32 %v27, %v28
    %31 = vst [vmem:[#allocation6] sm:$0xff] %v29
    %32 = vst [vmem:[#allocation6 + $0x8] sm:$0xff] %v30
    // Predicated region
    $region14: #{tpu_custom_call.1} parent=1 // pred_check
      _
    $region15: #{tpu_custom_call.1} parent=1 // pred_check_branch
      %34 = sbr.rel (0) target = $region17
    $region16: #{tpu_custom_call.1} parent=1 // pred_region
      %s36 = ssub.s32 256, 256
      %37 = vsyncadd [#allocation5], %s36
      %s39 = sshll.u32 [#allocation6], 4
      %s40 = int_to_ptr.vmem [resolvable:$true] %s39
      %42 = dma.vmem_to_hbm [thread:$0]  %s40, 256, %s2, [#allocation5]
    $region17: #{tpu_custom_call.1} parent=1 // pred_fallthru
      _
    // Predicated region
    $region18: #{tpu_custom_call.1} parent=1 // pred_check
      _
    $region19: #{tpu_custom_call.1} parent=1 // pred_check_branch
      %44 = sbr.rel (0) target = $region21
    $region20: #{tpu_custom_call.1} parent=1 // pred_region
      %45 = dma.done [#allocation5], 256
    $region21: #{tpu_custom_call.1} parent=1 // pred_fallthru
      _
    %46 = vsyncpa [#allocation4], 1
    %47 = vsyncpa [#allocation5], 1

</llo_original>
